<compile_context>
chip_gen: v5e
topology: v5e:2x2
jax: 0.10.0
libtpu: 0.0.40
codegen_flags: <defaults>
</compile_context>

<pallas_src>
import functools

import jax
import jax.numpy as jnp
from jax.experimental import pallas as pl
from jax.experimental.pallas import tpu as pltpu

O_PAD = 128  # lane-dense padded output width


# ---------------------------------------------------------------------------
# Kernel: full MLP forward for one batch tile, everything resident in VMEM.
#   x_ref  : (tb, Fin)
#   w0_ref : (Fin, H)           input layer weight
#   wh_ref : (n_layer, H, H)    stacked hidden weights
#   b_ref  : (n_layer + 1, H)   input + hidden biases
#   wp_ref : (H, O_PAD)         predict weight, zero-padded on lanes
#   bp_ref : (1, O_PAD)         predict bias,   zero-padded on lanes
#   o_ref  : (tb, O_PAD)
# ---------------------------------------------------------------------------
def psnn_kernel(x_ref, w0_ref, wh_ref, b_ref, wp_ref, bp_ref, o_ref, *,
                n_layer):
    wdt = w0_ref.dtype
    biases = b_ref[...]  # (n_layer + 1, H), tiny; load once

    # input layer + ReLU (f32 accumulate on the MXU)
    h = jnp.dot(x_ref[...].astype(wdt), w0_ref[...],
                preferred_element_type=jnp.float32)
    h = jnp.maximum(h + biases[0:1, :].astype(jnp.float32), 0.0)

    # hidden layers + ReLU (statically unrolled)
    for l in range(n_layer):
        h = jnp.dot(h.astype(wdt), wh_ref[l],
                    preferred_element_type=jnp.float32)
        h = jnp.maximum(h + biases[l + 1:l + 2, :].astype(jnp.float32), 0.0)

    # predict layer (no activation), lane-dense padded output
    out = jnp.dot(h.astype(wdt), wp_ref[...],
                  preferred_element_type=jnp.float32)
    out = out + bp_ref[...].astype(jnp.float32)
    o_ref[...] = out.astype(o_ref.dtype)


def _round_up(x, m):
    return ((x + m - 1) // m) * m


# ---------------------------------------------------------------------------
# Wrapper: coalesces/pads parameters, pads the batch to a multiple of the
# batch tile, tiles the batch dimension, and slices the padded output back.
# Weights/biases are broadcast (same block for every grid step).
# ---------------------------------------------------------------------------
@functools.partial(jax.jit, static_argnames=("tb",))
def psnn_forward(x, params, *, tb=None):
    w0, b0 = params[0]
    hidden = params[1:-1]
    wp, bp = params[-1]

    B, Fin = x.shape
    H = w0.shape[1]
    O = wp.shape[1]
    n_layer = len(hidden)

    # --- batch tile selection / padding ------------------------------------
    if tb is None:
        # Large tile to amortize per-step overhead; single step for small B.
        # (On v7x, callers wanting both TensorCores should pass tb <= B/2.)
        tb = min(2048, _round_up(B, 8))
    tb = max(8, _round_up(tb, 8))
    B_pad = _round_up(B, tb)
    if B_pad != B:
        x = jnp.pad(x, ((0, B_pad - B), (0, 0)))

    # --- coalesce parameters into 5 arrays ----------------------------------
    wh = jnp.stack([w for (w, _) in hidden], axis=0)              # (L, H, H)
    b_all = jnp.concatenate([b0] + [b for (_, b) in hidden], 0)   # (L+1, H)
    wp_pad = jnp.pad(wp, ((0, 0), (0, O_PAD - O)))                # (H, 128)
    bp_pad = jnp.pad(bp, ((0, 0), (0, O_PAD - O)))                # (1, 128)

    # weight/bias specs: full array, independent of the grid index
    def _wspec(shape):
        nd = len(shape)
        return pl.BlockSpec(shape, lambda i, _nd=nd: (0,) * _nd)

    flops = 2 * B_pad * (Fin * H + n_layer * H * H + H * O_PAD)
    bytes_accessed = (
        x.size * x.dtype.itemsize
        + w0.size * w0.dtype.itemsize + wh.size * wh.dtype.itemsize
        + b_all.size * b_all.dtype.itemsize
        + wp_pad.size * wp_pad.dtype.itemsize
        + bp_pad.size * bp_pad.dtype.itemsize
        + B_pad * O_PAD * 4
    )

    out_pad = pl.pallas_call(
        functools.partial(psnn_kernel, n_layer=n_layer),
        out_shape=jax.ShapeDtypeStruct((B_pad, O_PAD), jnp.float32),
        grid_spec=pltpu.PrefetchScalarGridSpec(
            num_scalar_prefetch=0,
            grid=(B_pad // tb,),
            in_specs=[
                pl.BlockSpec((tb, Fin), lambda i: (i, 0)),   # x (batch tiled)
                _wspec((Fin, H)),                            # input weight
                _wspec((n_layer, H, H)),                     # hidden weights
                _wspec((n_layer + 1, H)),                    # biases
                _wspec((H, O_PAD)),                          # predict weight
                _wspec((1, O_PAD)),                          # predict bias
            ],
            out_specs=pl.BlockSpec((tb, O_PAD), lambda i: (i, 0)),
        ),
        compiler_params=pltpu.CompilerParams(
            dimension_semantics=("parallel",),
        ),
        cost_estimate=pl.CostEstimate(
            flops=flops, transcendentals=0, bytes_accessed=bytes_accessed),
    )(x, w0, wh, b_all, wp_pad, bp_pad)

    return out_pad[:B, :O].astype(x.dtype)


# ---------------------------------------------------------------------------
# Deterministic parameter init (mimics torch.nn.Linear default: U(-k, k),
# k = 1/sqrt(fan_in)), stored as (in, out) / (1, out).
# ---------------------------------------------------------------------------
def init_params(key, input_dim=3, n_visible=3, n_hidden=64, n_output=3,
                n_layer=3, dtype=jnp.float32):
    dims_in = [input_dim * (n_visible + 1)] + [n_hidden] * n_layer + [n_hidden]
    dims_out = [n_hidden] * (n_layer + 1) + [n_output]
    params = []
    for din, dout in zip(dims_in, dims_out):
        key, kw, kb = jax.random.split(key, 3)
        bound = 1.0 / (din ** 0.5)
        w = jax.random.uniform(kw, (din, dout), dtype, -bound, bound)
        b = jax.random.uniform(kb, (1, dout), dtype, -bound, bound)
        params.append((w, b))
    return params


def psnn_reference(x, params):
    (w0, b0), (w1, b1), (w2, b2), (w3, b3), (wp, bp) = params
    h = jax.nn.relu(x @ w0 + b0)
    h = jax.nn.relu(h @ w1 + b1)
    h = jax.nn.relu(h @ w2 + b2)
    h = jax.nn.relu(h @ w3 + b3)
    return h @ wp + bp


if __name__ == "__main__":
    key = jax.random.PRNGKey(0)
    k_param, k_x = jax.random.split(key)

    input_dim, n_visible, n_hidden, n_output, n_layer = 3, 3, 64, 3, 3
    batch = 8
    feat = input_dim * (n_visible + 1)  # 12

    params = init_params(k_param, input_dim, n_visible, n_hidden,
                         n_output, n_layer)
    x = jax.random.normal(k_x, (batch, feat), jnp.float32)

    out = psnn_forward(x, params)            # auto tile: grid collapses to 1
    jax.block_until_ready(out)

    ref = psnn_reference(x, params)
    assert out.shape == (batch, n_output)
    assert jnp.allclose(out, ref, atol=1e-4, rtol=1e-4)

    # also exercise the multi-step / padded-batch path (B=20 not % tb)
    x2 = jax.random.normal(k_x, (20, feat), jnp.float32)
    out2 = psnn_forward(x2, params, tb=8)
    jax.block_until_ready(out2)
    assert out2.shape == (20, n_output)
    assert jnp.allclose(out2, psnn_reference(x2, params), atol=1e-4, rtol=1e-4)

    print("KERNEL_OK")
</pallas_src>

<mosaic_0001>
module attributes {stable_mosaic.version = 11 : i64} {
  func.func @psnn_kernel(%arg0: i32, %arg1: memref<8x12xf32, #tpu.memory_space<vmem>>, %arg2: memref<12x64xf32, #tpu.memory_space<vmem>>, %arg3: memref<3x64x64xf32, #tpu.memory_space<vmem>>, %arg4: memref<4x64xf32, #tpu.memory_space<vmem>>, %arg5: memref<64x128xf32, #tpu.memory_space<vmem>>, %arg6: memref<1x128xf32, #tpu.memory_space<vmem>>, %arg7: memref<8x128xf32, #tpu.memory_space<vmem>>) attributes {dimension_semantics = [#tpu.dimension_semantics<parallel>], iteration_bounds = array<i64: 1>, scalar_prefetch = 0 : i64, scratch_operands = 0 : i64, tpu.core_type = #tpu.core_type<tc>, window_params = [{transform_indices = @transform_0, window_bounds = array<i64: 8, 12>}, {pipeline_mode = #tpu.pipeline_mode<synchronous>, transform_indices = @transform_1, window_bounds = array<i64: 12, 64>}, {pipeline_mode = #tpu.pipeline_mode<synchronous>, transform_indices = @transform_2, window_bounds = array<i64: 3, 64, 64>}, {pipeline_mode = #tpu.pipeline_mode<synchronous>, transform_indices = @transform_3, window_bounds = array<i64: 4, 64>}, {pipeline_mode = #tpu.pipeline_mode<synchronous>, transform_indices = @transform_4, window_bounds = array<i64: 64, 128>}, {pipeline_mode = #tpu.pipeline_mode<synchronous>, transform_indices = @transform_5, window_bounds = array<i64: 1, 128>}, {transform_indices = @transform_6, window_bounds = array<i64: 8, 128>}]} {
    %c0 = arith.constant 0 : index
    %c0_0 = arith.constant 0 : index
    %0 = vector.load %arg4[%c0, %c0_0] : memref<4x64xf32, #tpu.memory_space<vmem>>, vector<4x64xf32>
    %c0_1 = arith.constant 0 : index
    %c0_2 = arith.constant 0 : index
    %1 = vector.load %arg1[%c0_1, %c0_2] : memref<8x12xf32, #tpu.memory_space<vmem>>, vector<8x12xf32>
    %c0_3 = arith.constant 0 : index
    %c0_4 = arith.constant 0 : index
    %2 = vector.load %arg2[%c0_3, %c0_4] : memref<12x64xf32, #tpu.memory_space<vmem>>, vector<12x64xf32>
    %cst = arith.constant dense<0.000000e+00> : vector<8x64xf32>
    %3 = tpu.matmul %1, %2, %cst {dimension_numbers = #tpu.dot_dimension_numbers<[1], [0], [0], [1], [0, 0, 1, 1], [], []>} : vector<8x12xf32>, vector<12x64xf32>, vector<8x64xf32> -> vector<8x64xf32>
    %4 = vector.extract_strided_slice %0 {offsets = [0, 0], sizes = [1, 64], strides = [1, 1]} : vector<4x64xf32> to vector<1x64xf32>
    %5 = vector.broadcast %4 : vector<1x64xf32> to vector<8x64xf32>
    %6 = arith.addf %3, %5 : vector<8x64xf32>
    %cst_5 = arith.constant 0.000000e+00 : f32
    %7 = vector.broadcast %cst_5 : f32 to vector<8x64xf32>
    %8 = arith.maximumf %6, %7 : vector<8x64xf32>
    %c0_6 = arith.constant 0 : index
    %c0_7 = arith.constant 0 : index
    %c0_8 = arith.constant 0 : index
    %9 = vector.load %arg3[%c0_6, %c0_7, %c0_8] : memref<3x64x64xf32, #tpu.memory_space<vmem>>, vector<1x64x64xf32>
    %10 = vector.shape_cast %9 : vector<1x64x64xf32> to vector<64x64xf32>
    %cst_9 = arith.constant dense<0.000000e+00> : vector<8x64xf32>
    %11 = tpu.matmul %8, %10, %cst_9 {dimension_numbers = #tpu.dot_dimension_numbers<[1], [0], [0], [1], [0, 0, 1, 1], [], []>} : vector<8x64xf32>, vector<64x64xf32>, vector<8x64xf32> -> vector<8x64xf32>
    %12 = vector.extract_strided_slice %0 {offsets = [1, 0], sizes = [1, 64], strides = [1, 1]} : vector<4x64xf32> to vector<1x64xf32>
    %13 = vector.broadcast %12 : vector<1x64xf32> to vector<8x64xf32>
    %14 = arith.addf %11, %13 : vector<8x64xf32>
    %cst_10 = arith.constant 0.000000e+00 : f32
    %15 = vector.broadcast %cst_10 : f32 to vector<8x64xf32>
    %16 = arith.maximumf %14, %15 : vector<8x64xf32>
    %c1 = arith.constant 1 : index
    %c0_11 = arith.constant 0 : index
    %c0_12 = arith.constant 0 : index
    %17 = vector.load %arg3[%c1, %c0_11, %c0_12] : memref<3x64x64xf32, #tpu.memory_space<vmem>>, vector<1x64x64xf32>
    %18 = vector.shape_cast %17 : vector<1x64x64xf32> to vector<64x64xf32>
    %cst_13 = arith.constant dense<0.000000e+00> : vector<8x64xf32>
    %19 = tpu.matmul %16, %18, %cst_13 {dimension_numbers = #tpu.dot_dimension_numbers<[1], [0], [0], [1], [0, 0, 1, 1], [], []>} : vector<8x64xf32>, vector<64x64xf32>, vector<8x64xf32> -> vector<8x64xf32>
    %20 = vector.extract_strided_slice %0 {offsets = [2, 0], sizes = [1, 64], strides = [1, 1]} : vector<4x64xf32> to vector<1x64xf32>
    %21 = vector.broadcast %20 : vector<1x64xf32> to vector<8x64xf32>
    %22 = arith.addf %19, %21 : vector<8x64xf32>
    %cst_14 = arith.constant 0.000000e+00 : f32
    %23 = vector.broadcast %cst_14 : f32 to vector<8x64xf32>
    %24 = arith.maximumf %22, %23 : vector<8x64xf32>
    %c2 = arith.constant 2 : index
    %c0_15 = arith.constant 0 : index
    %c0_16 = arith.constant 0 : index
    %25 = vector.load %arg3[%c2, %c0_15, %c0_16] : memref<3x64x64xf32, #tpu.memory_space<vmem>>, vector<1x64x64xf32>
    %26 = vector.shape_cast %25 : vector<1x64x64xf32> to vector<64x64xf32>
    %cst_17 = arith.constant dense<0.000000e+00> : vector<8x64xf32>
    %27 = tpu.matmul %24, %26, %cst_17 {dimension_numbers = #tpu.dot_dimension_numbers<[1], [0], [0], [1], [0, 0, 1, 1], [], []>} : vector<8x64xf32>, vector<64x64xf32>, vector<8x64xf32> -> vector<8x64xf32>
    %28 = vector.extract_strided_slice %0 {offsets = [3, 0], sizes = [1, 64], strides = [1, 1]} : vector<4x64xf32> to vector<1x64xf32>
    %29 = vector.broadcast %28 : vector<1x64xf32> to vector<8x64xf32>
    %30 = arith.addf %27, %29 : vector<8x64xf32>
    %cst_18 = arith.constant 0.000000e+00 : f32
    %31 = vector.broadcast %cst_18 : f32 to vector<8x64xf32>
    %32 = arith.maximumf %30, %31 : vector<8x64xf32>
    %c0_19 = arith.constant 0 : index
    %c0_20 = arith.constant 0 : index
    %33 = vector.load %arg5[%c0_19, %c0_20] : memref<64x128xf32, #tpu.memory_space<vmem>>, vector<64x128xf32>
    %cst_21 = arith.constant dense<0.000000e+00> : vector<8x128xf32>
    %34 = tpu.matmul %32, %33, %cst_21 {dimension_numbers = #tpu.dot_dimension_numbers<[1], [0], [0], [1], [0, 0, 1, 1], [], []>} : vector<8x64xf32>, vector<64x128xf32>, vector<8x128xf32> -> vector<8x128xf32>
    %c0_22 = arith.constant 0 : index
    %c0_23 = arith.constant 0 : index
    %35 = vector.load %arg6[%c0_22, %c0_23] : memref<1x128xf32, #tpu.memory_space<vmem>>, vector<1x128xf32>
    %36 = vector.broadcast %35 : vector<1x128xf32> to vector<8x128xf32>
    %37 = arith.addf %34, %36 : vector<8x128xf32>
    %c0_24 = arith.constant 0 : index
    %c0_25 = arith.constant 0 : index
    %38 = vector.load %arg7[%c0_24, %c0_25] : memref<8x128xf32, #tpu.memory_space<vmem>>, vector<8x128xf32>
    tpu.vector_store %arg7[%c0_24, %c0_25], %37 {strides = array<i32>} : memref<8x128xf32, #tpu.memory_space<vmem>>, vector<8x128xf32>,
    return
  }
  func.func @transform_0(%arg0: i32) -> (i32, i32) {
    %c0_i32 = arith.constant 0 : i32
    %c0_i32_0 = arith.constant 0 : i32
    return %arg0, %c0_i32 : i32, i32
  }
  func.func @transform_1(%arg0: i32) -> (i32, i32) {
    %c0_i32 = arith.constant 0 : i32
    %c0_i32_0 = arith.constant 0 : i32
    %c0_i32_1 = arith.constant 0 : i32
    return %c0_i32, %c0_i32_0 : i32, i32
  }
  func.func @transform_2(%arg0: i32) -> (i32, i32, i32) {
    %c0_i32 = arith.constant 0 : i32
    %c0_i32_0 = arith.constant 0 : i32
    %c0_i32_1 = arith.constant 0 : i32
    %c0_i32_2 = arith.constant 0 : i32
    return %c0_i32, %c0_i32_0, %c0_i32_1 : i32, i32, i32
  }
  func.func @transform_3(%arg0: i32) -> (i32, i32) {
    %c0_i32 = arith.constant 0 : i32
    %c0_i32_0 = arith.constant 0 : i32
    %c0_i32_1 = arith.constant 0 : i32
    return %c0_i32, %c0_i32_0 : i32, i32
  }
  func.func @transform_4(%arg0: i32) -> (i32, i32) {
    %c0_i32 = arith.constant 0 : i32
    %c0_i32_0 = arith.constant 0 : i32
    %c0_i32_1 = arith.constant 0 : i32
    return %c0_i32, %c0_i32_0 : i32, i32
  }
  func.func @transform_5(%arg0: i32) -> (i32, i32) {
    %c0_i32 = arith.constant 0 : i32
    %c0_i32_0 = arith.constant 0 : i32
    %c0_i32_1 = arith.constant 0 : i32
    return %c0_i32, %c0_i32_0 : i32, i32
  }
  func.func @transform_6(%arg0: i32) -> (i32, i32) {
    %c0_i32 = arith.constant 0 : i32
    %c0_i32_0 = arith.constant 0 : i32
    return %arg0, %c0_i32 : i32, i32
  }
}

</mosaic_0001>

<llo_original>
// kernel: psnn_forward.1
$region0: #{psnn_forward.1}
  #allocation0 [shape = 'u32[]', space=smem, size = 0x4, offset = 0x4, fixed_abs, tag = 'smem constant byte address 0x4 - core index']
  #allocation1 [shape = 'u32[72,128]{1,0:T(1,128)}', space=vmem, size = 0x9000, scoped, tag = 'internal scratch']
  %s0 = inlined_call_operand.vmem [shape: f32[8,12], index: 0, kind: input, shape index: {}]
  %s1 = inlined_call_operand.vmem [shape: f32[12,64], index: 1, kind: input, shape index: {}]
  %s2 = inlined_call_operand.vmem [shape: f32[3,64,64], index: 2, kind: input, shape index: {}]
  %s3 = inlined_call_operand.vmem [shape: f32[4,64], index: 3, kind: input, shape index: {}]
  %s4 = inlined_call_operand.vmem [shape: f32[64,128], index: 4, kind: input, shape index: {}]
  %s5 = inlined_call_operand.vmem [shape: f32[1,128], index: 5, kind: input, shape index: {}]
  %s6 = inlined_call_operand.vmem [shape: f32[8,128], index: 6, kind: output, shape index: {}]
  %s7 = sld [smem:[#allocation0]]
  $region34: #{psnn_forward.1} parent=0
    _
  %s9 = ssub.s32 1, %s7
  %s10 = scalar_select 0, %s9, %s7
  // Predicated region
  $region2: #{psnn_forward.1} parent=0 // pred_check
    _
  $region3: #{psnn_forward.1} parent=0 // pred_check_branch
    %12 = sbr.rel (0) target = $region5
  $region4: #{psnn_forward.1} parent=0 // pred_region
    _
  $region5: #{psnn_forward.1} parent=0 // pred_fallthru
    _
  // Predicated region
  $region6: #{psnn_forward.1} parent=0 // pred_check
    _
  $region7: #{psnn_forward.1} parent=0 // pred_check_branch
    %14 = sbr.rel (0) target = $region9
  $region8: #{psnn_forward.1} parent=0 // pred_region
    _
  $region9: #{psnn_forward.1} parent=0 // pred_fallthru
    _
  // Predicated region
  $region10: #{psnn_forward.1} parent=0 // pred_check
    _
  $region11: #{psnn_forward.1} parent=0 // pred_check_branch
    %16 = sbr.rel (0) target = $region13
  $region12: #{psnn_forward.1} parent=0 // pred_region
    _
  $region13: #{psnn_forward.1} parent=0 // pred_fallthru
    _
  // Predicated region
  $region14: #{psnn_forward.1} parent=0 // pred_check
    _
  $region15: #{psnn_forward.1} parent=0 // pred_check_branch
    %18 = sbr.rel (0) target = $region17
  $region16: #{psnn_forward.1} parent=0 // pred_region
    _
  $region17: #{psnn_forward.1} parent=0 // pred_fallthru
    _
  // Predicated region
  $region18: #{psnn_forward.1} parent=0 // pred_check
    _
  $region19: #{psnn_forward.1} parent=0 // pred_check_branch
    %20 = sbr.rel (0) target = $region21
  $region20: #{psnn_forward.1} parent=0 // pred_region
    _
  $region21: #{psnn_forward.1} parent=0 // pred_fallthru
    _
  // Predicated region
  $region22: #{psnn_forward.1} parent=0 // pred_check
    _
  $region23: #{psnn_forward.1} parent=0 // pred_check_branch
    %22 = sbr.rel (0) target = $region25
  $region24: #{psnn_forward.1} parent=0 // pred_region
    _
  $region25: #{psnn_forward.1} parent=0 // pred_fallthru
    _
  %v23 = vld [vmem:[%s3] sm:$0xf]
  %v24 = vld [vmem:[%s0] sm:$0xff]
  %v25 = vld [vmem:[%s1] sm:$0xff]
  %v26 = vld [vmem:[%s1 + $0x8] sm:$0xf]
  %v27 = vperm.slane %v23, 0
  %vm28 = vcmask 97280
  %v30 = vsel %vm28, %v24, 0
  %vm32 = vcmask 1043456
  %v34 = vsel %vm32, %v26, 0
  %36 = vmatpush.msra.mxu0 0.0
  %37 = vmatpush.msra.mxu0 0.0
  %38 = vmatpush.msra.mxu0 0.0
  %39 = vmatpush.msra.mxu0 0.0
  %40 = vmatpush.msra.mxu0 0.0
  %41 = vmatpush.msra.mxu0 0.0
  %42 = vmatpush.msra.mxu0 0.0
  %43 = vmatpush.msra.mxu0 0.0
  %44 = vmatpush.msra.mxu0 0.0
  %45 = vmatpush.msra.mxu0 0.0
  %46 = vmatpush.msra.mxu0 0.0
  %47 = vmatpush.msra.mxu0 0.0
  %48 = vmatpush.msra.mxu0 0.0
  %49 = vmatpush.msra.mxu0 0.0
  %50 = vmatpush.msra.mxu0 %v34
  %51 = vmatpush.msra.mxu0 %v25
  %52 = vmatmul.f32.gmra.mxu0 %v30
  %v53 = vpop.f32.mrf.mxu0
  %v54 = vadd.f32 %v27, %v53
  %55 = vdwg.mxu0
  %v56 = vmax.f32 %v54, 0.0
  %v57 = vld [vmem:[%s2] sm:$0xff]
  %v58 = vld [vmem:[%s2 + $0x8] sm:$0xff]
  %v59 = vld [vmem:[%s2 + $0x10] sm:$0xff]
  %v60 = vld [vmem:[%s2 + $0x18] sm:$0xff]
  %v61 = vld [vmem:[%s2 + $0x20] sm:$0xff]
  %v62 = vld [vmem:[%s2 + $0x28] sm:$0xff]
  %v63 = vld [vmem:[%s2 + $0x30] sm:$0xff]
  %v64 = vld [vmem:[%s2 + $0x38] sm:$0xff]
  %v65 = vperm.slane %v23, 1
  %vm66 = vcmask 523264
  %v68 = vsel %vm66, %v56, 0
  %70 = vmatpush.msra.mxu0 0.0
  %71 = vmatpush.msra.mxu0 0.0
  %72 = vmatpush.msra.mxu0 0.0
  %73 = vmatpush.msra.mxu0 0.0
  %74 = vmatpush.msra.mxu0 0.0
  %75 = vmatpush.msra.mxu0 0.0
  %76 = vmatpush.msra.mxu0 0.0
  %77 = vmatpush.msra.mxu0 0.0
  %78 = vmatpush.msra.mxu0 %v64
  %79 = vmatpush.msra.mxu0 %v63
  %80 = vmatpush.msra.mxu0 %v62
  %81 = vmatpush.msra.mxu0 %v61
  %82 = vmatpush.msra.mxu0 %v60
  %83 = vmatpush.msra.mxu0 %v59
  %84 = vmatpush.msra.mxu0 %v58
  %85 = vmatpush.msra.mxu0 %v57
  %86 = vmatmul.f32.gmra.mxu0 %v68
  %v87 = vpop.f32.mrf.mxu0
  %v88 = vadd.f32 %v65, %v87
  %89 = vdwg.mxu0
  %v90 = vmax.f32 %v88, 0.0
  %s91 = scalar_lea.vmem %s2, 64
  %v92 = vld [vmem:[%s91] sm:$0xff]
  %v93 = vld [vmem:[%s91 + $0x8] sm:$0xff]
  %v94 = vld [vmem:[%s91 + $0x10] sm:$0xff]
  %v95 = vld [vmem:[%s91 + $0x18] sm:$0xff]
  %v96 = vld [vmem:[%s91 + $0x20] sm:$0xff]
  %v97 = vld [vmem:[%s91 + $0x28] sm:$0xff]
  %v98 = vld [vmem:[%s91 + $0x30] sm:$0xff]
  %v99 = vld [vmem:[%s91 + $0x38] sm:$0xff]
  %v100 = vperm.slane %v23, 2
  %v102 = vsel %vm66, %v90, 0
  %104 = vmatpush.msra.mxu0 0.0
  %105 = vmatpush.msra.mxu0 0.0
  %106 = vmatpush.msra.mxu0 0.0
  %107 = vmatpush.msra.mxu0 0.0
  %108 = vmatpush.msra.mxu0 0.0
  %109 = vmatpush.msra.mxu0 0.0
  %110 = vmatpush.msra.mxu0 0.0
  %111 = vmatpush.msra.mxu0 0.0
  %112 = vmatpush.msra.mxu0 %v99
  %113 = vmatpush.msra.mxu0 %v98
  %114 = vmatpush.msra.mxu0 %v97
  %115 = vmatpush.msra.mxu0 %v96
  %116 = vmatpush.msra.mxu0 %v95
  %117 = vmatpush.msra.mxu0 %v94
  %118 = vmatpush.msra.mxu0 %v93
  %119 = vmatpush.msra.mxu0 %v92
  %120 = vmatmul.f32.gmra.mxu0 %v102
  %v121 = vpop.f32.mrf.mxu0
  %v122 = vadd.f32 %v100, %v121
  %123 = vdwg.mxu0
  %v124 = vmax.f32 %v122, 0.0
  %s125 = scalar_lea.vmem %s2, 128
  %v126 = vld [vmem:[%s125] sm:$0xff]
  %v127 = vld [vmem:[%s125 + $0x8] sm:$0xff]
  %v128 = vld [vmem:[%s125 + $0x10] sm:$0xff]
  %v129 = vld [vmem:[%s125 + $0x18] sm:$0xff]
  %v130 = vld [vmem:[%s125 + $0x20] sm:$0xff]
  %v131 = vld [vmem:[%s125 + $0x28] sm:$0xff]
  %v132 = vld [vmem:[%s125 + $0x30] sm:$0xff]
  %v133 = vld [vmem:[%s125 + $0x38] sm:$0xff]
  %v134 = vperm.slane %v23, 3
  %v136 = vsel %vm66, %v124, 0
  %138 = vmatpush.msra.mxu0 0.0
  %139 = vmatpush.msra.mxu0 0.0
  %140 = vmatpush.msra.mxu0 0.0
  %141 = vmatpush.msra.mxu0 0.0
  %142 = vmatpush.msra.mxu0 0.0
  %143 = vmatpush.msra.mxu0 0.0
  %144 = vmatpush.msra.mxu0 0.0
  %145 = vmatpush.msra.mxu0 0.0
  %146 = vmatpush.msra.mxu0 %v133
  %147 = vmatpush.msra.mxu0 %v132
  %148 = vmatpush.msra.mxu0 %v131
  %149 = vmatpush.msra.mxu0 %v130
  %150 = vmatpush.msra.mxu0 %v129
  %151 = vmatpush.msra.mxu0 %v128
  %152 = vmatpush.msra.mxu0 %v127
  %153 = vmatpush.msra.mxu0 %v126
  %154 = vmatmul.f32.gmra.mxu0 %v136
  %v155 = vpop.f32.mrf.mxu0
  %v156 = vadd.f32 %v134, %v155
  %157 = vdwg.mxu0
  %v158 = vmax.f32 %v156, 0.0
  %v159 = vld [vmem:[%s4] sm:$0xff]
  %v160 = vld [vmem:[%s4 + $0x8] sm:$0xff]
  %v161 = vld [vmem:[%s4 + $0x10] sm:$0xff]
  %v162 = vld [vmem:[%s4 + $0x18] sm:$0xff]
  %v163 = vld [vmem:[%s4 + $0x20] sm:$0xff]
  %v164 = vld [vmem:[%s4 + $0x28] sm:$0xff]
  %v165 = vld [vmem:[%s4 + $0x30] sm:$0xff]
  %v166 = vld [vmem:[%s4 + $0x38] sm:$0xff]
  %v167 = vld [vmem:[%s5] sm:$0x1]
  %v169 = vperm.slane %v167, 0
  %v172 = vsel %vm66, %v158, 0
  %174 = vmatpush.msra.mxu0 0.0
  %175 = vmatpush.msra.mxu0 0.0
  %176 = vmatpush.msra.mxu0 0.0
  %177 = vmatpush.msra.mxu0 0.0
  %178 = vmatpush.msra.mxu0 0.0
  %179 = vmatpush.msra.mxu0 0.0
  %180 = vmatpush.msra.mxu0 0.0
  %181 = vmatpush.msra.mxu0 0.0
  %182 = vmatpush.msra.mxu0 %v166
  %183 = vmatpush.msra.mxu0 %v165
  %184 = vmatpush.msra.mxu0 %v164
  %185 = vmatpush.msra.mxu0 %v163
  %186 = vmatpush.msra.mxu0 %v162
  %187 = vmatpush.msra.mxu0 %v161
  %188 = vmatpush.msra.mxu0 %v160
  %189 = vmatpush.msra.mxu0 %v159
  %190 = vmatmul.f32.gmra.mxu0 %v172
  %v191 = vpop.f32.mrf.mxu0
  %v192 = vadd.f32 %v169, %v191
  %193 = vdwg.mxu0
  %194 = vst [vmem:[%s6] sm:$0xff] %v192
  // Predicated region
  $region26: #{psnn_forward.1} parent=0 // pred_check
    _
  $region27: #{psnn_forward.1} parent=0 // pred_check_branch
    %196 = sbr.rel (0) target = $region29
  $region28: #{psnn_forward.1} parent=0 // pred_region
    _
  $region29: #{psnn_forward.1} parent=0 // pred_fallthru
    _
  // Predicated region
  $region30: #{psnn_forward.1} parent=0 // pred_check
    _
  $region31: #{psnn_forward.1} parent=0 // pred_check_branch
    %198 = sbr.rel (0) target = $region33
  $region32: #{psnn_forward.1} parent=0 // pred_region
    _
  $region33: #{psnn_forward.1} parent=0 // pred_fallthru
    _

</llo_original>
